<compile_context>
chip_gen: v6e
topology: v6e:2x2x1
jax: 0.10.0
libtpu: 0.0.40
codegen_flags: <defaults>
</compile_context>

<pallas_src>
import jax
import jax.numpy as jnp
from jax.experimental import pallas as pl
from jax.experimental.pallas import tpu as pltpu

_MIB = 1024 * 1024


def _round_up(v, m):
    return (v + m - 1) // m * m


def _gated_sigmoid(y):
    """y * sigmoid(1.702 * y), numerically stable; exp/recip ride the EUP."""
    z = 1.702 * y
    e = jnp.exp(-jnp.abs(z))                  # never overflows
    r = pl.reciprocal(1.0 + e, approx=True)   # approximate EUP reciprocal
    gate = jnp.where(z >= 0.0, r, e * r)      # stable sigmoid(z)
    return y * gate


def _kernel_single_k(x_ref, w_ref, b_ref, o_ref):
    # Fast path: whole K reduction in one block -> no accumulator scratch.
    y = jnp.dot(
        x_ref[...].astype(jnp.bfloat16),
        w_ref[...].astype(jnp.bfloat16),
        preferred_element_type=jnp.float32,
    ) + b_ref[...].astype(jnp.float32)
    o_ref[...] = _gated_sigmoid(y).astype(o_ref.dtype)


def _kernel_k_loop(x_ref, w_ref, b_ref, o_ref, acc_ref):
    # General path: K reduction over the innermost grid axis with a resident
    # f32 accumulator; bias folded into the k == 0 init.
    k = pl.program_id(2)

    @pl.when(k == 0)
    def _init():
        acc_ref[...] = jnp.zeros_like(acc_ref) + b_ref[...].astype(jnp.float32)

    acc_ref[...] += jnp.dot(
        x_ref[...].astype(jnp.bfloat16),
        w_ref[...].astype(jnp.bfloat16),
        preferred_element_type=jnp.float32,
    )

    @pl.when(k == pl.num_programs(2) - 1)
    def _finalize():
        o_ref[...] = _gated_sigmoid(acc_ref[...]).astype(o_ref.dtype)


def _tpu_config():
    """(physical VMEM bytes, has-two-TensorCores), with safe fallbacks."""
    vmem_bytes = 64 * _MIB
    two_tc = False
    try:
        info = pltpu.get_tpu_info()
        vmem_bytes = int(getattr(info, "vmem_capacity_bytes", vmem_bytes))
    except Exception:
        pass
    try:
        kind = jax.devices()[0].device_kind.lower()
        two_tc = "v7" in kind
        if "v5" in kind or "v6" in kind:
            vmem_bytes = max(vmem_bytes, 128 * _MIB)
    except Exception:
        pass
    return vmem_bytes, two_tc


@jax.jit
def approximate_gelu(x, w, b):
    """x: [..., dim_in], w: [dim_in, dim_out], b: [dim_out] -> [..., dim_out]."""
    orig_shape = x.shape
    dim_in = orig_shape[-1]
    dim_out = w.shape[1]
    out_dtype = x.dtype

    x2d = x.reshape(-1, dim_in)
    M = x2d.shape[0]
    K = dim_in
    N = dim_out

    vmem_bytes, two_tc = _tpu_config()
    big_vmem = vmem_bytes >= 128 * _MIB
    tm_default = 1024 if big_vmem else 512   # v5e/v6e vs v7x tiles
    tn_default = 1024 if big_vmem else 512
    tk_default = 512
    vmem_cap = (100 if big_vmem else 48) * _MIB  # headroom vs physical VMEM

    # --- K tiling: single block when it fits (fast path, no scratch);
    #     otherwise 128-aligned K tiles; K is zero-padded only in that rare
    #     fallback (zero padding keeps the reduction exact).
    if K <= 2048:
        tile_k = K
        K_pad = K
    else:
        tile_k = tk_default
        K_pad = _round_up(K, tile_k)
    grid_k = K_pad // tile_k

    # --- N tiling: never pad N (avoids an output-slice HBM copy); keep the
    #     tile 128-aligned when dim_out allows so stores stay lane-dense.
    if N >= 128:
        tile_n = min(tn_default, (N // 128) * 128)
    else:
        tile_n = N
    grid_n = pl.cdiv(N, tile_n)

    # --- M tiling: no padding (ragged last tile handled by masked writeback).
    tile_m = min(tm_default, _round_up(M, 8))
    grid_m = pl.cdiv(M, tile_m)
    if two_tc and grid_m * grid_n == 1 and M >= 16:
        # Two TensorCores: make sure the parallel grid has >= 2 points.
        tile_m = max(8, _round_up(pl.cdiv(M, 2), 8))
        grid_m = pl.cdiv(M, tile_m)

    if K_pad != K:
        # Rare fallback (huge, misaligned dim_in); costs one x copy.
        x2d = jnp.pad(x2d, ((0, 0), (0, K_pad - K)))
        w = jnp.pad(w, ((0, K_pad - K), (0, 0)))
    b2d = b.reshape(1, N)

    # --- explicit VMEM budget from the double-buffered tile footprint.
    xb = jnp.dtype(x.dtype).itemsize
    wb = jnp.dtype(w.dtype).itemsize
    bb = jnp.dtype(b.dtype).itemsize
    ob = jnp.dtype(out_dtype).itemsize
    footprint = (2 * tile_m * tile_k * xb
                 + 2 * tile_k * tile_n * wb
                 + 2 * tile_n * bb
                 + 2 * tile_m * tile_n * ob)
    if grid_k > 1:
        footprint += tile_m * tile_n * 4   # f32 accumulator scratch
    vmem_limit = int(min(vmem_cap, max(32 * _MIB, 2 * footprint)))

    # x is re-read grid_n times (its index_map ignores j); w/b grid_m times.
    cost = pl.CostEstimate(
        flops=2 * M * K_pad * N,
        transcendentals=M * N,
        bytes_accessed=(grid_n * M * K_pad * xb
                        + grid_m * (K_pad * N * wb + N * bb)
                        + M * N * ob),
    )

    if grid_k == 1:
        out2d = pl.pallas_call(
            _kernel_single_k,
            out_shape=jax.ShapeDtypeStruct((M, N), out_dtype),
            grid_spec=pltpu.PrefetchScalarGridSpec(
                num_scalar_prefetch=0,
                grid=(grid_m, grid_n),
                in_specs=[
                    pl.BlockSpec((tile_m, tile_k), lambda i, j: (i, 0)),
                    pl.BlockSpec((tile_k, tile_n), lambda i, j: (0, j)),
                    pl.BlockSpec((1, tile_n), lambda i, j: (0, j)),
                ],
                out_specs=pl.BlockSpec((tile_m, tile_n), lambda i, j: (i, j)),
            ),
            compiler_params=pltpu.CompilerParams(
                dimension_semantics=("parallel", "parallel"),
                vmem_limit_bytes=vmem_limit,
            ),
            cost_estimate=cost,
        )(x2d, w, b2d)
    else:
        out2d = pl.pallas_call(
            _kernel_k_loop,
            out_shape=jax.ShapeDtypeStruct((M, N), out_dtype),
            grid_spec=pltpu.PrefetchScalarGridSpec(
                num_scalar_prefetch=0,
                grid=(grid_m, grid_n, grid_k),
                in_specs=[
                    pl.BlockSpec((tile_m, tile_k), lambda i, j, k: (i, k)),
                    pl.BlockSpec((tile_k, tile_n), lambda i, j, k: (k, j)),
                    pl.BlockSpec((1, tile_n), lambda i, j, k: (0, j)),
                ],
                out_specs=pl.BlockSpec((tile_m, tile_n),
                                       lambda i, j, k: (i, j)),
                scratch_shapes=[pltpu.VMEM((tile_m, tile_n), jnp.float32)],
            ),
            compiler_params=pltpu.CompilerParams(
                dimension_semantics=("parallel", "parallel", "arbitrary"),
                vmem_limit_bytes=vmem_limit,
            ),
            cost_estimate=cost,
        )(x2d, w, b2d)

    return out2d.reshape(*orig_shape[:-1], dim_out)


if __name__ == "__main__":
    # Module config: ApproximateGELU(dim_in=32, dim_out=32, bias=True)
    batch, seq, dim_in, dim_out = 2, 8, 32, 32

    key = jax.random.PRNGKey(0)
    kx, kw, kb = jax.random.split(key, 3)

    x = jax.random.normal(kx, (batch, seq, dim_in), dtype=jnp.float32)
    # PyTorch stores weight as (dim_out, dim_in); keep the transposed
    # (dim_in, dim_out) layout so the kernel computes x @ w directly.
    bound = 1.0 / (dim_in ** 0.5)
    w = jax.random.uniform(kw, (dim_in, dim_out), jnp.float32, -bound, bound)
    b = jax.random.uniform(kb, (dim_out,), jnp.float32, -bound, bound)

    out = jax.block_until_ready(approximate_gelu(x, w, b))

    # Reference in plain JAX. Kernel feeds the MXU bf16 and uses an
    # approximate EUP reciprocal in the sigmoid -> ~1e-2-level tolerance.
    y_ref = x.reshape(-1, dim_in) @ w + b
    ref = (y_ref * jax.nn.sigmoid(1.702 * y_ref)).reshape(batch, seq, dim_out)
    assert out.shape == ref.shape
    assert jnp.allclose(out, ref, atol=2e-2, rtol=2e-2), float(
        jnp.max(jnp.abs(out - ref)))

    # Also exercise the general K-loop path (dim_in above the single-block cap).
    M2, K2, N2 = 96, 2560, 384
    kx2, kw2, kb2 = jax.random.split(jax.random.PRNGKey(1), 3)
    x2 = jax.random.normal(kx2, (M2, K2), dtype=jnp.float32)
    bound2 = 1.0 / (K2 ** 0.5)
    w2 = jax.random.uniform(kw2, (K2, N2), jnp.float32, -bound2, bound2)
    b2 = jax.random.uniform(kb2, (N2,), jnp.float32, -bound2, bound2)
    out2 = jax.block_until_ready(approximate_gelu(x2, w2, b2))
    y2 = x2 @ w2 + b2
    ref2 = y2 * jax.nn.sigmoid(1.702 * y2)
    assert jnp.allclose(out2, ref2, atol=2e-2, rtol=2e-2), float(
        jnp.max(jnp.abs(out2 - ref2)))

    print("KERNEL_OK")
</pallas_src>

<mosaic_0001>
module attributes {stable_mosaic.version = 11 : i64} {
  func.func @_kernel_single_k(%arg0: i32, %arg1: i32, %arg2: memref<16x32xf32, #tpu.memory_space<vmem>>, %arg3: memref<32x32xf32, #tpu.memory_space<vmem>>, %arg4: memref<1x32xf32, #tpu.memory_space<vmem>>, %arg5: memref<16x32xf32, #tpu.memory_space<vmem>>) attributes {dimension_semantics = [#tpu.dimension_semantics<parallel>, #tpu.dimension_semantics<parallel>], iteration_bounds = array<i64: 1, 1>, scalar_prefetch = 0 : i64, scratch_operands = 0 : i64, tpu.core_type = #tpu.core_type<tc>, window_params = [{transform_indices = @transform_0, window_bounds = array<i64: 16, 32>}, {transform_indices = @transform_1, window_bounds = array<i64: 32, 32>}, {transform_indices = @transform_2, window_bounds = array<i64: 1, 32>}, {transform_indices = @transform_3, window_bounds = array<i64: 16, 32>}]} {
    %c0 = arith.constant 0 : index
    %c0_0 = arith.constant 0 : index
    %0 = vector.load %arg2[%c0, %c0_0] : memref<16x32xf32, #tpu.memory_space<vmem>>, vector<16x32xf32>
    %1 = arith.truncf %0 : vector<16x32xf32> to vector<16x32xbf16>
    %c0_1 = arith.constant 0 : index
    %c0_2 = arith.constant 0 : index
    %2 = vector.load %arg3[%c0_1, %c0_2] : memref<32x32xf32, #tpu.memory_space<vmem>>, vector<32x32xf32>
    %3 = arith.truncf %2 : vector<32x32xf32> to vector<32x32xbf16>
    %cst = arith.constant dense<0.000000e+00> : vector<16x32xf32>
    %4 = tpu.matmul %1, %3, %cst {dimension_numbers = #tpu.dot_dimension_numbers<[1], [0], [0], [1], [0, 0, 1, 1], [], []>} : vector<16x32xbf16>, vector<32x32xbf16>, vector<16x32xf32> -> vector<16x32xf32>
    %c0_3 = arith.constant 0 : index
    %c0_4 = arith.constant 0 : index
    %5 = vector.load %arg4[%c0_3, %c0_4] : memref<1x32xf32, #tpu.memory_space<vmem>>, vector<1x32xf32>
    %6 = vector.broadcast %5 : vector<1x32xf32> to vector<16x32xf32>
    %7 = arith.addf %4, %6 : vector<16x32xf32>
    %cst_5 = arith.constant 1.702000e+00 : f32
    %8 = vector.broadcast %cst_5 : f32 to vector<16x32xf32>
    %9 = arith.mulf %8, %7 : vector<16x32xf32>
    %10 = math.absf %9 : vector<16x32xf32>
    %cst_6 = arith.constant 0.000000e+00 : f32
    %11 = vector.broadcast %cst_6 : f32 to vector<16x32xf32>
    %12 = arith.subf %11, %10 : vector<16x32xf32>
    %13 = math.exp %12 : vector<16x32xf32>
    %cst_7 = arith.constant 1.000000e+00 : f32
    %14 = vector.broadcast %cst_7 : f32 to vector<16x32xf32>
    %15 = arith.addf %14, %13 : vector<16x32xf32>
    %16 = tpu.reciprocal %15 {approx = true} : vector<16x32xf32> -> vector<16x32xf32>
    %cst_8 = arith.constant 0.000000e+00 : f32
    %17 = vector.broadcast %cst_8 : f32 to vector<16x32xf32>
    %18 = arith.cmpf oge, %9, %17 : vector<16x32xf32>
    %19 = arith.mulf %13, %16 : vector<16x32xf32>
    %20 = arith.select %18, %16, %19 : vector<16x32xi1>, vector<16x32xf32>
    %21 = arith.mulf %7, %20 : vector<16x32xf32>
    %c0_9 = arith.constant 0 : index
    %c0_10 = arith.constant 0 : index
    %22 = vector.load %arg5[%c0_9, %c0_10] : memref<16x32xf32, #tpu.memory_space<vmem>>, vector<16x32xf32>
    tpu.vector_store %arg5[%c0_9, %c0_10], %21 {strides = array<i32>} : memref<16x32xf32, #tpu.memory_space<vmem>>, vector<16x32xf32>,
    return
  }
  func.func @transform_0(%arg0: i32, %arg1: i32) -> (i32, i32) {
    %c0_i32 = arith.constant 0 : i32
    %c0_i32_0 = arith.constant 0 : i32
    return %arg0, %c0_i32 : i32, i32
  }
  func.func @transform_1(%arg0: i32, %arg1: i32) -> (i32, i32) {
    %c0_i32 = arith.constant 0 : i32
    %c0_i32_0 = arith.constant 0 : i32
    return %c0_i32, %arg1 : i32, i32
  }
  func.func @transform_2(%arg0: i32, %arg1: i32) -> (i32, i32) {
    %c0_i32 = arith.constant 0 : i32
    %c0_i32_0 = arith.constant 0 : i32
    return %c0_i32, %arg1 : i32, i32
  }
  func.func @transform_3(%arg0: i32, %arg1: i32) -> (i32, i32) {
    %c0_i32 = arith.constant 0 : i32
    return %arg0, %arg1 : i32, i32
  }
}

</mosaic_0001>

<llo_original>
// kernel: approximate_gelu.1
$region0: #{approximate_gelu.1}
  #allocation0 [shape = 'u32[]', space=smem, size = 0x4, offset = 0x4, fixed_abs, tag = 'smem constant byte address 0x4 - core index']
  #allocation1 [shape = 'u32[144,128]{1,0:T(1,128)}', space=vmem, size = 0x12000, scoped, tag = 'internal scratch']
  %s0 = inlined_call_operand.hbm [shape: f32[16,32], index: 0, kind: input, shape index: {}]
  %s1 = inlined_call_operand.hbm [shape: f32[32,32], index: 1, kind: input, shape index: {}]
  %s2 = inlined_call_operand.vmem [shape: f32[1,32], index: 2, kind: input, shape index: {}]
  %s3 = inlined_call_operand.hbm [shape: f32[16,32], index: 3, kind: output, shape index: {}]
  %s4 = sld [smem:[#allocation0]]
  $region30: #{approximate_gelu.1} parent=0
    _
  %s6 = ssub.s32 1, %s4
  %s7 = scalar_select 0, %s6, %s4
  $region1: #{approximate_gelu.1} parent=0
    #allocation2 [shape = 'u8[8192]{0}', space=vmem, size = 0x2000, scoped, tag = 'input window, operand 0, single buffered']
    #allocation3 [shape = 's32[1]{0}', space=sflag, size = 0x4, scoped, tag = 'scoped memory for approximate_gelu.1']
    #allocation4 [shape = 's32[1]{0}', space=sflag, size = 0x4, scoped, tag = 'scoped memory for approximate_gelu.1']
    #allocation5 [shape = 'u8[16384]{0}', space=vmem, size = 0x4000, scoped, tag = 'input window, operand 1, single buffered']
    #allocation6 [shape = 's32[1]{0}', space=sflag, size = 0x4, scoped, tag = 'scoped memory for approximate_gelu.1']
    #allocation7 [shape = 'u8[8192]{0}', space=vmem, size = 0x2000, scoped, tag = 'output window, operand 0, single buffered']
    %8 = vsyncpa [#allocation3], 0
    %9 = vsyncpa [#allocation6], 0
    %10 = vsyncpa [#allocation4], 0
    // Predicated region
    $region2: #{approximate_gelu.1} parent=1 // pred_check
      _
    $region3: #{approximate_gelu.1} parent=1 // pred_check_branch
      %12 = sbr.rel (0) target = $region5
    $region4: #{approximate_gelu.1} parent=1 // pred_region
      %s14 = ssub.s32 256, 256
      %15 = vsyncadd [#allocation3], %s14
      %s16 = sshll.u32 [#allocation2], 4
      %s17 = int_to_ptr.vmem [resolvable:$true] %s16
      %22 = dma.hbm_to_vmem [thread:$0]  %s0, 256, %s17, [#allocation3], 128, 128, 8
    $region5: #{approximate_gelu.1} parent=1 // pred_fallthru
      _
    // Predicated region
    $region6: #{approximate_gelu.1} parent=1 // pred_check
      _
    $region7: #{approximate_gelu.1} parent=1 // pred_check_branch
      %24 = sbr.rel (0) target = $region9
    $region8: #{approximate_gelu.1} parent=1 // pred_region
      %s26 = ssub.s32 512, 512
      %27 = vsyncadd [#allocation6], %s26
      %s28 = sshll.u32 [#allocation5], 4
      %s29 = int_to_ptr.vmem [resolvable:$true] %s28
      %34 = dma.hbm_to_vmem [thread:$0]  %s1, 512, %s29, [#allocation6], 128, 128, 8
    $region9: #{approximate_gelu.1} parent=1 // pred_fallthru
      _
    // Predicated region
    $region10: #{approximate_gelu.1} parent=1 // pred_check
      _
    $region11: #{approximate_gelu.1} parent=1 // pred_check_branch
      %36 = sbr.rel (0) target = $region13
    $region12: #{approximate_gelu.1} parent=1 // pred_region
      _
    $region13: #{approximate_gelu.1} parent=1 // pred_fallthru
      _
    // Predicated region
    $region14: #{approximate_gelu.1} parent=1 // pred_check
      _
    $region15: #{approximate_gelu.1} parent=1 // pred_check_branch
      %38 = sbr.rel (0) target = $region17
    $region16: #{approximate_gelu.1} parent=1 // pred_region
      %39 = dma.done [#allocation3], 256
    $region17: #{approximate_gelu.1} parent=1 // pred_fallthru
      _
    // Predicated region
    $region18: #{approximate_gelu.1} parent=1 // pred_check
      _
    $region19: #{approximate_gelu.1} parent=1 // pred_check_branch
      %41 = sbr.rel (0) target = $region21
    $region20: #{approximate_gelu.1} parent=1 // pred_region
      %42 = dma.done [#allocation6], 512
    $region21: #{approximate_gelu.1} parent=1 // pred_fallthru
      _
    %v44 = vld [vmem:[#allocation2] sm:$0xff]
    %v45 = vld [vmem:[#allocation2 + $0x8] sm:$0xff]
    %v46 = vpack.c.bf16 %v45, %v44
    %v47 = vld [vmem:[#allocation5] sm:$0xff]
    %v48 = vld [vmem:[#allocation5 + $0x8] sm:$0xff]
    %v49 = vld [vmem:[#allocation5 + $0x10] sm:$0xff]
    %v50 = vld [vmem:[#allocation5 + $0x18] sm:$0xff]
    %v51 = vpack.c.bf16 %v48, %v47
    %v52 = vpack.c.bf16 %v50, %v49
    %v53 = vld [vmem:[%s2] sm:$0x1]
    %v55 = vlaneseq
    %v56 = vshrl.u32 %v55, 7
    %v57 = vsub.s32 0, %v56
    %v58 = vrot.slane %v53, %v57
    %vm60 = vcmask 261120
    %v62 = vsel %vm60, %v46, 0
    %64 = vmatprep.subr.bf16.mxu0 0
    %65 = vmatpush1.bf16.msra.mxu0 0
    %66 = vmatprep.subr.bf16.mxu0 0
    %67 = vmatpush1.bf16.msra.mxu0 0
    %68 = vmatprep.subr.bf16.mxu0 0
    %69 = vmatpush1.bf16.msra.mxu0 0
    %70 = vmatprep.subr.bf16.mxu0 0
    %71 = vmatpush1.bf16.msra.mxu0 0
    %72 = vmatprep.subr.bf16.mxu0 0
    %73 = vmatpush1.bf16.msra.mxu0 0
    %74 = vmatprep.subr.bf16.mxu0 0
    %75 = vmatpush1.bf16.msra.mxu0 0
    %76 = vmatprep.subr.bf16.mxu0 0
    %77 = vmatpush1.bf16.msra.mxu0 %v52
    %78 = vmatprep.subr.bf16.mxu0 0
    %79 = vmatpush1.bf16.msra.mxu0 %v51
    %80 = vmatprep.subr.bf16.mxu0 0
    %81 = vmatpush2.bf16.msra.mxu0 0
    %82 = vmatprep.subr.bf16.mxu0 0
    %83 = vmatpush2.bf16.msra.mxu0 0
    %84 = vmatprep.subr.bf16.mxu0 0
    %85 = vmatpush2.bf16.msra.mxu0 0
    %86 = vmatprep.subr.bf16.mxu0 0
    %87 = vmatpush2.bf16.msra.mxu0 0
    %88 = vmatprep.subr.bf16.mxu0 0
    %89 = vmatpush2.bf16.msra.mxu0 0
    %90 = vmatprep.subr.bf16.mxu0 0
    %91 = vmatpush2.bf16.msra.mxu0 0
    %92 = vmatprep.subr.bf16.mxu0 0
    %93 = vmatpush2.bf16.msra.mxu0 0
    %94 = vmatprep.subr.bf16.mxu0 0
    %95 = vmatpush2.bf16.msra.mxu0 0
    %96 = vmatprep.mubr.bf16.mxu0 0
    %97 = vmatmul.mubr.bf16.gmra.mxu0 %v62
    %v98 = vpop.f32.mrf.mxu0
    %v99 = vadd.f32 %v58, %v98
    %v100 = vpop.f32.mrf.mxu0
    %v101 = vpop.f32.mrf.mxu0
    %v102 = vadd.f32 %v58, %v101
    %v103 = vpop.f32.mrf.mxu0
    %104 = vdwg.mxu0
    %v105 = vmul.f32 %v99, 1.702
    %v106 = vmul.f32 %v102, 1.702
    %v107 = vand.u32 2147483647, %v105
    %v108 = vand.u32 2147483647, %v106
    %v109 = vsub.f32 0.0, %v107
    %v110 = vsub.f32 0.0, %v108
    %v111 = vmul.f32 %v109, 1.442695
    %v112 = vpow.pop %v111
    %v113 = vmul.f32 %v110, 1.442695
    %v114 = vpow.pop %v113
    %v115 = vadd.f32 %v112, 1.0
    %v116 = vadd.f32 %v114, 1.0
    %v117 = vrcp.pop %v115
    %v118 = vrcp.pop %v116
    %vm119 = vcmp.ge.f32.partialorder %v105, 0.0
    %vm120 = vcmp.ge.f32.partialorder %v106, 0.0
    %v121 = vmul.f32 %v112, %v117
    %v122 = vmul.f32 %v114, %v118
    %v123 = vsel %vm119, %v117, %v121
    %v124 = vsel %vm120, %v118, %v122
    %v125 = vmul.f32 %v99, %v123
    %v126 = vmul.f32 %v102, %v124
    %127 = vst.msk [vmem:[#allocation7] sm:$0xff] %vm60, %v125
    %128 = vst.msk [vmem:[#allocation7 + $0x8] sm:$0xff] %vm60, %v126
    // Predicated region
    $region22: #{approximate_gelu.1} parent=1 // pred_check
      _
    $region23: #{approximate_gelu.1} parent=1 // pred_check_branch
      %130 = sbr.rel (0) target = $region25
    $region24: #{approximate_gelu.1} parent=1 // pred_region
      %s132 = ssub.s32 256, 256
      %133 = vsyncadd [#allocation4], %s132
      %s134 = sshll.u32 [#allocation7], 4
      %s135 = int_to_ptr.vmem [resolvable:$true] %s134
      %140 = dma.vmem_to_hbm [thread:$0]  %s135, 256, %s3, [#allocation4], 128, 128, 8
    $region25: #{approximate_gelu.1} parent=1 // pred_fallthru
      _
    // Predicated region
    $region26: #{approximate_gelu.1} parent=1 // pred_check
      _
    $region27: #{approximate_gelu.1} parent=1 // pred_check_branch
      %142 = sbr.rel (0) target = $region29
    $region28: #{approximate_gelu.1} parent=1 // pred_region
      %143 = dma.done [#allocation4], 256
    $region29: #{approximate_gelu.1} parent=1 // pred_fallthru
      _
    %144 = vsyncpa [#allocation3], 1
    %145 = vsyncpa [#allocation6], 1
    %146 = vsyncpa [#allocation4], 1

</llo_original>
